<compile_context>
chip_gen: v6e
topology: v6e:2x2x1
jax: 0.10.0
libtpu: 0.0.40
codegen_flags: <defaults>
</compile_context>

<pallas_src>
import jax
import jax.numpy as jnp
from jax.experimental import pallas as pl
from jax.experimental.pallas import tpu as pltpu

IN_DIM = 6
IN_PAD = 8        # fan-in padded to the f32 sublane multiple
HIDDEN = 128
OUT_DIM = 56
EXP_DIM = 50
POSE_DIM = OUT_DIM - EXP_DIM   # 6


def _mlp_kernel(x_ref, w1_ref, b1_ref, w2e_ref, b2e_ref, w2p_ref, b2p_ref,
                exp_ref, pose_ref):
    # One batch tile per grid step; weights are VMEM-resident (constant index maps).
    x = x_ref[...]                                                    # (TB, 8)
    h = jnp.dot(x, w1_ref[...], preferred_element_type=jnp.float32)   # (TB, 128)
    h = jnp.maximum(h + b1_ref[...], 0.0)                             # bias + ReLU

    exp_ref[...] = (
        jnp.dot(h, w2e_ref[...], preferred_element_type=jnp.float32) + b2e_ref[...]
    ).astype(exp_ref.dtype)                                           # (TB, 50)

    # pose head: cols 0:3 of w2p/b2p were zeroed at prep time, so this already
    # implements pose_params[:, 0:3] = 0 with no in-kernel masking.
    pose_ref[...] = (
        jnp.dot(h, w2p_ref[...], preferred_element_type=jnp.float32) + b2p_ref[...]
    ).astype(pose_ref.dtype)                                          # (TB, 6)


def prepare_params(w1, b1, w2, b2):
    """One-time forward-only parameter prep:
       - pad fan-in 6 -> 8 with zero rows,
       - split the 56-wide head into exp (50) and pose (6) heads,
       - fold `pose_params[:, 0:3] = 0` into the pose head weights/bias.
    Inputs are (in, out)-layout weights (transpose of nn.Linear.weight).
    """
    w1 = jnp.asarray(w1, jnp.float32)
    b1 = jnp.asarray(b1, jnp.float32).reshape(1, HIDDEN)
    w2 = jnp.asarray(w2, jnp.float32)
    b2 = jnp.asarray(b2, jnp.float32).reshape(1, OUT_DIM)

    w1p = jnp.zeros((IN_PAD, HIDDEN), jnp.float32).at[:IN_DIM, :].set(w1)
    w2e = w2[:, :EXP_DIM]
    b2e = b2[:, :EXP_DIM]
    w2p = w2[:, EXP_DIM:].at[:, 0:3].set(0.0)
    b2p = b2[:, EXP_DIM:].at[:, 0:3].set(0.0)
    return w1p, b1, w2e, b2e, w2p, b2p


def mynet_forward(x, params, *, max_tile=256):
    """x: (B, 6) float32. Returns (exp_params (B, 50), pose_params (B, 6))."""
    w1p, b1p, w2e, b2e, w2p, b2p = params
    B = x.shape[0]

    # Batch tile: multiple of 8 (f32 sublane), capped so double-buffered tiles
    # stay far under v7x's 64 MiB physical / 32 MiB scoped VMEM.
    TB = min(max_tile, ((B + 7) // 8) * 8)
    B_pad = ((B + TB - 1) // TB) * TB

    # Pad batch to a multiple of TB and fan-in 6 -> 8 (zeros are inert).
    xp = jnp.zeros((B_pad, IN_PAD), jnp.float32).at[:B, :IN_DIM].set(
        x.astype(jnp.float32))

    grid = (B_pad // TB,)

    exp, pose = pl.pallas_call(
        _mlp_kernel,
        out_shape=(
            jax.ShapeDtypeStruct((B_pad, EXP_DIM), jnp.float32),
            jax.ShapeDtypeStruct((B_pad, POSE_DIM), jnp.float32),
        ),
        grid_spec=pltpu.PrefetchScalarGridSpec(
            num_scalar_prefetch=0,
            grid=grid,
            in_specs=[
                pl.BlockSpec((TB, IN_PAD), lambda i: (i, 0)),        # x tile
                pl.BlockSpec((IN_PAD, HIDDEN), lambda i: (0, 0)),    # w1 (resident)
                pl.BlockSpec((1, HIDDEN), lambda i: (0, 0)),         # b1
                pl.BlockSpec((HIDDEN, EXP_DIM), lambda i: (0, 0)),   # w2 exp head
                pl.BlockSpec((1, EXP_DIM), lambda i: (0, 0)),        # b2 exp head
                pl.BlockSpec((HIDDEN, POSE_DIM), lambda i: (0, 0)),  # w2 pose head
                pl.BlockSpec((1, POSE_DIM), lambda i: (0, 0)),       # b2 pose head
            ],
            out_specs=[
                pl.BlockSpec((TB, EXP_DIM), lambda i: (i, 0)),
                pl.BlockSpec((TB, POSE_DIM), lambda i: (i, 0)),
            ],
        ),
        compiler_params=pltpu.CompilerParams(
            dimension_semantics=("parallel",),   # shard batch tiles across TCs
            vmem_limit_bytes=32 * 1024 * 1024,   # safe on v5e/v6e/v7x
        ),
        cost_estimate=pl.CostEstimate(
            flops=2 * B_pad * (IN_PAD * HIDDEN + HIDDEN * OUT_DIM),
            bytes_accessed=4 * (B_pad * IN_PAD
                                + IN_PAD * HIDDEN + HIDDEN
                                + HIDDEN * OUT_DIM + OUT_DIM
                                + B_pad * OUT_DIM),
            transcendentals=0,
        ),
    )(xp, w1p, b1p, w2e, b2e, w2p, b2p)

    if B_pad != B:
        exp = exp[:B]
        pose = pose[:B]
    return exp, pose


def init_params(key):
    """Deterministic init mimicking nn.Linear default U(-1/sqrt(fan_in), 1/sqrt(fan_in))."""
    k1, k2, k3, k4 = jax.random.split(key, 4)
    bound1 = 1.0 / jnp.sqrt(float(IN_DIM))
    bound2 = 1.0 / jnp.sqrt(float(HIDDEN))
    w1 = jax.random.uniform(k1, (IN_DIM, HIDDEN), jnp.float32, -bound1, bound1)
    b1 = jax.random.uniform(k2, (1, HIDDEN), jnp.float32, -bound1, bound1)
    w2 = jax.random.uniform(k3, (HIDDEN, OUT_DIM), jnp.float32, -bound2, bound2)
    b2 = jax.random.uniform(k4, (1, OUT_DIM), jnp.float32, -bound2, bound2)
    return w1, b1, w2, b2


if __name__ == "__main__":
    key = jax.random.PRNGKey(0)
    k_x, k_p = jax.random.split(key)

    B = 8
    x = jax.random.normal(k_x, (B, IN_DIM), jnp.float32)
    w1, b1, w2, b2 = init_params(k_p)

    params = prepare_params(w1, b1, w2, b2)
    exp_params, pose_params = mynet_forward(x, params)
    jax.block_until_ready((exp_params, pose_params))

    # Reference check in plain JAX (original, unfolded parameters).
    h_ref = jnp.maximum(x @ w1 + b1, 0.0)
    out_ref = h_ref @ w2 + b2
    exp_ref = out_ref[:, :EXP_DIM]
    pose_ref = out_ref[:, EXP_DIM:].at[:, 0:3].set(0.0)

    assert exp_params.shape == (B, EXP_DIM)
    assert pose_params.shape == (B, POSE_DIM)
    assert jnp.allclose(exp_params, exp_ref, atol=1e-5)
    assert jnp.allclose(pose_params, pose_ref, atol=1e-5)
    assert jnp.all(pose_params[:, 0:3] == 0.0)

    # TODO(synk): the PyTorch forward also print()s the outputs; intentionally omitted.
    print("KERNEL_OK")
</pallas_src>

<mosaic_0001>
module attributes {stable_mosaic.version = 11 : i64} {
  func.func @_mlp_kernel(%arg0: i32, %arg1: memref<8x8xf32, #tpu.memory_space<vmem>>, %arg2: memref<8x128xf32, #tpu.memory_space<vmem>>, %arg3: memref<1x128xf32, #tpu.memory_space<vmem>>, %arg4: memref<128x50xf32, #tpu.memory_space<vmem>>, %arg5: memref<1x50xf32, #tpu.memory_space<vmem>>, %arg6: memref<128x6xf32, #tpu.memory_space<vmem>>, %arg7: memref<1x6xf32, #tpu.memory_space<vmem>>, %arg8: memref<8x50xf32, #tpu.memory_space<vmem>>, %arg9: memref<8x6xf32, #tpu.memory_space<vmem>>) attributes {dimension_semantics = [#tpu.dimension_semantics<parallel>], iteration_bounds = array<i64: 1>, scalar_prefetch = 0 : i64, scratch_operands = 0 : i64, tpu.core_type = #tpu.core_type<tc>, window_params = [{transform_indices = @transform_0, window_bounds = array<i64: 8, 8>}, {pipeline_mode = #tpu.pipeline_mode<synchronous>, transform_indices = @transform_1, window_bounds = array<i64: 8, 128>}, {pipeline_mode = #tpu.pipeline_mode<synchronous>, transform_indices = @transform_2, window_bounds = array<i64: 1, 128>}, {pipeline_mode = #tpu.pipeline_mode<synchronous>, transform_indices = @transform_3, window_bounds = array<i64: 128, 50>}, {pipeline_mode = #tpu.pipeline_mode<synchronous>, transform_indices = @transform_4, window_bounds = array<i64: 1, 50>}, {pipeline_mode = #tpu.pipeline_mode<synchronous>, transform_indices = @transform_5, window_bounds = array<i64: 128, 6>}, {pipeline_mode = #tpu.pipeline_mode<synchronous>, transform_indices = @transform_6, window_bounds = array<i64: 1, 6>}, {transform_indices = @transform_7, window_bounds = array<i64: 8, 50>}, {transform_indices = @transform_8, window_bounds = array<i64: 8, 6>}]} {
    %c0 = arith.constant 0 : index
    %c0_0 = arith.constant 0 : index
    %0 = vector.load %arg1[%c0, %c0_0] : memref<8x8xf32, #tpu.memory_space<vmem>>, vector<8x8xf32>
    %c0_1 = arith.constant 0 : index
    %c0_2 = arith.constant 0 : index
    %1 = vector.load %arg2[%c0_1, %c0_2] : memref<8x128xf32, #tpu.memory_space<vmem>>, vector<8x128xf32>
    %cst = arith.constant dense<0.000000e+00> : vector<8x128xf32>
    %2 = tpu.matmul %0, %1, %cst {dimension_numbers = #tpu.dot_dimension_numbers<[1], [0], [0], [1], [0, 0, 1, 1], [], []>} : vector<8x8xf32>, vector<8x128xf32>, vector<8x128xf32> -> vector<8x128xf32>
    %c0_3 = arith.constant 0 : index
    %c0_4 = arith.constant 0 : index
    %3 = vector.load %arg3[%c0_3, %c0_4] : memref<1x128xf32, #tpu.memory_space<vmem>>, vector<1x128xf32>
    %4 = vector.broadcast %3 : vector<1x128xf32> to vector<8x128xf32>
    %5 = arith.addf %2, %4 : vector<8x128xf32>
    %cst_5 = arith.constant 0.000000e+00 : f32
    %6 = vector.broadcast %cst_5 : f32 to vector<8x128xf32>
    %7 = arith.maximumf %5, %6 : vector<8x128xf32>
    %c0_6 = arith.constant 0 : index
    %c0_7 = arith.constant 0 : index
    %8 = vector.load %arg4[%c0_6, %c0_7] : memref<128x50xf32, #tpu.memory_space<vmem>>, vector<128x50xf32>
    %cst_8 = arith.constant dense<0.000000e+00> : vector<8x50xf32>
    %9 = tpu.matmul %7, %8, %cst_8 {dimension_numbers = #tpu.dot_dimension_numbers<[1], [0], [0], [1], [0, 0, 1, 1], [], []>} : vector<8x128xf32>, vector<128x50xf32>, vector<8x50xf32> -> vector<8x50xf32>
    %c0_9 = arith.constant 0 : index
    %c0_10 = arith.constant 0 : index
    %10 = vector.load %arg5[%c0_9, %c0_10] : memref<1x50xf32, #tpu.memory_space<vmem>>, vector<1x50xf32>
    %11 = vector.broadcast %10 : vector<1x50xf32> to vector<8x50xf32>
    %12 = arith.addf %9, %11 : vector<8x50xf32>
    %c0_11 = arith.constant 0 : index
    %c0_12 = arith.constant 0 : index
    %13 = vector.load %arg8[%c0_11, %c0_12] : memref<8x50xf32, #tpu.memory_space<vmem>>, vector<8x50xf32>
    tpu.vector_store %arg8[%c0_11, %c0_12], %12 {strides = array<i32>} : memref<8x50xf32, #tpu.memory_space<vmem>>, vector<8x50xf32>,
    %c0_13 = arith.constant 0 : index
    %c0_14 = arith.constant 0 : index
    %14 = vector.load %arg6[%c0_13, %c0_14] : memref<128x6xf32, #tpu.memory_space<vmem>>, vector<128x6xf32>
    %cst_15 = arith.constant dense<0.000000e+00> : vector<8x6xf32>
    %15 = tpu.matmul %7, %14, %cst_15 {dimension_numbers = #tpu.dot_dimension_numbers<[1], [0], [0], [1], [0, 0, 1, 1], [], []>} : vector<8x128xf32>, vector<128x6xf32>, vector<8x6xf32> -> vector<8x6xf32>
    %c0_16 = arith.constant 0 : index
    %c0_17 = arith.constant 0 : index
    %16 = vector.load %arg7[%c0_16, %c0_17] : memref<1x6xf32, #tpu.memory_space<vmem>>, vector<1x6xf32>
    %17 = vector.broadcast %16 : vector<1x6xf32> to vector<8x6xf32>
    %18 = arith.addf %15, %17 : vector<8x6xf32>
    %c0_18 = arith.constant 0 : index
    %c0_19 = arith.constant 0 : index
    %19 = vector.load %arg9[%c0_18, %c0_19] : memref<8x6xf32, #tpu.memory_space<vmem>>, vector<8x6xf32>
    tpu.vector_store %arg9[%c0_18, %c0_19], %18 {strides = array<i32>} : memref<8x6xf32, #tpu.memory_space<vmem>>, vector<8x6xf32>,
    return
  }
  func.func @transform_0(%arg0: i32) -> (i32, i32) {
    %c0_i32 = arith.constant 0 : i32
    %c0_i32_0 = arith.constant 0 : i32
    return %arg0, %c0_i32 : i32, i32
  }
  func.func @transform_1(%arg0: i32) -> (i32, i32) {
    %c0_i32 = arith.constant 0 : i32
    %c0_i32_0 = arith.constant 0 : i32
    %c0_i32_1 = arith.constant 0 : i32
    return %c0_i32, %c0_i32_0 : i32, i32
  }
  func.func @transform_2(%arg0: i32) -> (i32, i32) {
    %c0_i32 = arith.constant 0 : i32
    %c0_i32_0 = arith.constant 0 : i32
    %c0_i32_1 = arith.constant 0 : i32
    return %c0_i32, %c0_i32_0 : i32, i32
  }
  func.func @transform_3(%arg0: i32) -> (i32, i32) {
    %c0_i32 = arith.constant 0 : i32
    %c0_i32_0 = arith.constant 0 : i32
    %c0_i32_1 = arith.constant 0 : i32
    return %c0_i32, %c0_i32_0 : i32, i32
  }
  func.func @transform_4(%arg0: i32) -> (i32, i32) {
    %c0_i32 = arith.constant 0 : i32
    %c0_i32_0 = arith.constant 0 : i32
    %c0_i32_1 = arith.constant 0 : i32
    return %c0_i32, %c0_i32_0 : i32, i32
  }
  func.func @transform_5(%arg0: i32) -> (i32, i32) {
    %c0_i32 = arith.constant 0 : i32
    %c0_i32_0 = arith.constant 0 : i32
    %c0_i32_1 = arith.constant 0 : i32
    return %c0_i32, %c0_i32_0 : i32, i32
  }
  func.func @transform_6(%arg0: i32) -> (i32, i32) {
    %c0_i32 = arith.constant 0 : i32
    %c0_i32_0 = arith.constant 0 : i32
    %c0_i32_1 = arith.constant 0 : i32
    return %c0_i32, %c0_i32_0 : i32, i32
  }
  func.func @transform_7(%arg0: i32) -> (i32, i32) {
    %c0_i32 = arith.constant 0 : i32
    %c0_i32_0 = arith.constant 0 : i32
    return %arg0, %c0_i32 : i32, i32
  }
  func.func @transform_8(%arg0: i32) -> (i32, i32) {
    %c0_i32 = arith.constant 0 : i32
    %c0_i32_0 = arith.constant 0 : i32
    return %arg0, %c0_i32 : i32, i32
  }
}

</mosaic_0001>

<llo_original>
// kernel: tpu_custom_call.1
$region0: #{tpu_custom_call.1}
  #allocation0 [shape = 'u32[]', space=smem, size = 0x4, offset = 0x4, fixed_abs, tag = 'smem constant byte address 0x4 - core index']
  #allocation1 [shape = 'u32[144,128]{1,0:T(1,128)}', space=vmem, size = 0x12000, scoped, tag = 'internal scratch']
  %s0 = inlined_call_operand.vmem [shape: f32[8,8], index: 0, kind: input, shape index: {}]
  %s1 = inlined_call_operand.vmem [shape: f32[8,128], index: 1, kind: input, shape index: {}]
  %s2 = inlined_call_operand.vmem [shape: f32[1,128], index: 2, kind: input, shape index: {}]
  %s3 = inlined_call_operand.vmem [shape: f32[128,50], index: 3, kind: input, shape index: {}]
  %s4 = inlined_call_operand.vmem [shape: f32[1,50], index: 4, kind: input, shape index: {}]
  %s5 = inlined_call_operand.vmem [shape: f32[128,6], index: 5, kind: input, shape index: {}]
  %s6 = inlined_call_operand.vmem [shape: f32[1,6], index: 6, kind: input, shape index: {}]
  %s7 = inlined_call_operand.hbm [shape: f32[8,50], index: 7, kind: output, shape index: {0}]
  %s8 = inlined_call_operand.hbm [shape: f32[8,6], index: 8, kind: output, shape index: {1}]
  %9 = xla_tuple %s7, %s8
  %s10 = sld [smem:[#allocation0]]
  $region46: #{tpu_custom_call.1} parent=0
    _
  %s12 = ssub.s32 1, %s10
  %s13 = scalar_select 0, %s12, %s10
  $region1: #{tpu_custom_call.1} parent=0
    #allocation2 [shape = 'u8[4096]{0}', space=vmem, size = 0x1000, scoped, tag = 'output window, operand 0, single buffered']
    #allocation3 [shape = 's32[1]{0}', space=sflag, size = 0x4, scoped, tag = 'scoped memory for tpu_custom_call.1']
    #allocation4 [shape = 'u8[4096]{0}', space=vmem, size = 0x1000, scoped, tag = 'output window, operand 1, single buffered']
    #allocation5 [shape = 's32[1]{0}', space=sflag, size = 0x4, scoped, tag = 'scoped memory for tpu_custom_call.1']
    %14 = vsyncpa [#allocation3], 0
    %15 = vsyncpa [#allocation5], 0
    // Predicated region
    $region2: #{tpu_custom_call.1} parent=1 // pred_check
      _
    $region3: #{tpu_custom_call.1} parent=1 // pred_check_branch
      %17 = sbr.rel (0) target = $region5
    $region4: #{tpu_custom_call.1} parent=1 // pred_region
      _
    $region5: #{tpu_custom_call.1} parent=1 // pred_fallthru
      _
    // Predicated region
    $region6: #{tpu_custom_call.1} parent=1 // pred_check
      _
    $region7: #{tpu_custom_call.1} parent=1 // pred_check_branch
      %19 = sbr.rel (0) target = $region9
    $region8: #{tpu_custom_call.1} parent=1 // pred_region
      _
    $region9: #{tpu_custom_call.1} parent=1 // pred_fallthru
      _
    // Predicated region
    $region10: #{tpu_custom_call.1} parent=1 // pred_check
      _
    $region11: #{tpu_custom_call.1} parent=1 // pred_check_branch
      %21 = sbr.rel (0) target = $region13
    $region12: #{tpu_custom_call.1} parent=1 // pred_region
      _
    $region13: #{tpu_custom_call.1} parent=1 // pred_fallthru
      _
    // Predicated region
    $region14: #{tpu_custom_call.1} parent=1 // pred_check
      _
    $region15: #{tpu_custom_call.1} parent=1 // pred_check_branch
      %23 = sbr.rel (0) target = $region17
    $region16: #{tpu_custom_call.1} parent=1 // pred_region
      _
    $region17: #{tpu_custom_call.1} parent=1 // pred_fallthru
      _
    // Predicated region
    $region18: #{tpu_custom_call.1} parent=1 // pred_check
      _
    $region19: #{tpu_custom_call.1} parent=1 // pred_check_branch
      %25 = sbr.rel (0) target = $region21
    $region20: #{tpu_custom_call.1} parent=1 // pred_region
      _
    $region21: #{tpu_custom_call.1} parent=1 // pred_fallthru
      _
    // Predicated region
    $region22: #{tpu_custom_call.1} parent=1 // pred_check
      _
    $region23: #{tpu_custom_call.1} parent=1 // pred_check_branch
      %27 = sbr.rel (0) target = $region25
    $region24: #{tpu_custom_call.1} parent=1 // pred_region
      _
    $region25: #{tpu_custom_call.1} parent=1 // pred_fallthru
      _
    // Predicated region
    $region26: #{tpu_custom_call.1} parent=1 // pred_check
      _
    $region27: #{tpu_custom_call.1} parent=1 // pred_check_branch
      %29 = sbr.rel (0) target = $region29
    $region28: #{tpu_custom_call.1} parent=1 // pred_region
      _
    $region29: #{tpu_custom_call.1} parent=1 // pred_fallthru
      _
    %v30 = vld [vmem:[%s0] sm:$0xff]
    %v31 = vld [vmem:[%s1] sm:$0xff]
    %v32 = vld [vmem:[%s2] sm:$0x1]
    %v34 = vlaneseq
    %v35 = vshrl.u32 %v34, 7
    %v36 = vsub.s32 0, %v35
    %v37 = vrot.slane %v32, %v36
    %vm39 = vcmask 64512
    %v41 = vsel %vm39, %v30, 0
    %43 = vmatprep.subr.mxu0 0.0
    %44 = vmatpush1.msra.mxu0 0.0
    %45 = vmatprep.subr.mxu0 0.0
    %46 = vmatpush1.msra.mxu0 0.0
    %47 = vmatprep.subr.mxu0 0.0
    %48 = vmatpush1.msra.mxu0 0.0
    %49 = vmatprep.subr.mxu0 0.0
    %50 = vmatpush1.msra.mxu0 0.0
    %51 = vmatprep.subr.mxu0 0.0
    %52 = vmatpush1.msra.mxu0 0.0
    %53 = vmatprep.subr.mxu0 0.0
    %54 = vmatpush1.msra.mxu0 0.0
    %55 = vmatprep.subr.mxu0 0.0
    %56 = vmatpush1.msra.mxu0 0.0
    %57 = vmatprep.subr.mxu0 0.0
    %58 = vmatpush1.msra.mxu0 0.0
    %59 = vmatprep.subr.mxu0 0.0
    %60 = vmatpush1.msra.mxu0 0.0
    %61 = vmatprep.subr.mxu0 0.0
    %62 = vmatpush1.msra.mxu0 0.0
    %63 = vmatprep.subr.mxu0 0.0
    %64 = vmatpush1.msra.mxu0 0.0
    %65 = vmatprep.subr.mxu0 0.0
    %66 = vmatpush1.msra.mxu0 0.0
    %67 = vmatprep.subr.mxu0 0.0
    %68 = vmatpush1.msra.mxu0 0.0
    %69 = vmatprep.subr.mxu0 0.0
    %70 = vmatpush1.msra.mxu0 0.0
    %71 = vmatprep.subr.mxu0 0.0
    %72 = vmatpush1.msra.mxu0 0.0
    %73 = vmatprep.subr.mxu0 0.0
    %74 = vmatpush1.msra.mxu0 %v31
    %75 = vmatprep.subr.mxu0 0.0
    %76 = vmatpush2.msra.mxu0 0.0
    %77 = vmatprep.subr.mxu0 0.0
    %78 = vmatpush2.msra.mxu0 0.0
    %79 = vmatprep.subr.mxu0 0.0
    %80 = vmatpush2.msra.mxu0 0.0
    %81 = vmatprep.subr.mxu0 0.0
    %82 = vmatpush2.msra.mxu0 0.0
    %83 = vmatprep.subr.mxu0 0.0
    %84 = vmatpush2.msra.mxu0 0.0
    %85 = vmatprep.subr.mxu0 0.0
    %86 = vmatpush2.msra.mxu0 0.0
    %87 = vmatprep.subr.mxu0 0.0
    %88 = vmatpush2.msra.mxu0 0.0
    %89 = vmatprep.subr.mxu0 0.0
    %90 = vmatpush2.msra.mxu0 0.0
    %91 = vmatprep.subr.mxu0 0.0
    %92 = vmatpush2.msra.mxu0 0.0
    %93 = vmatprep.subr.mxu0 0.0
    %94 = vmatpush2.msra.mxu0 0.0
    %95 = vmatprep.subr.mxu0 0.0
    %96 = vmatpush2.msra.mxu0 0.0
    %97 = vmatprep.subr.mxu0 0.0
    %98 = vmatpush2.msra.mxu0 0.0
    %99 = vmatprep.subr.mxu0 0.0
    %100 = vmatpush2.msra.mxu0 0.0
    %101 = vmatprep.subr.mxu0 0.0
    %102 = vmatpush2.msra.mxu0 0.0
    %103 = vmatprep.subr.mxu0 0.0
    %104 = vmatpush2.msra.mxu0 0.0
    %105 = vmatprep.subr.mxu0 0.0
    %106 = vmatpush2.msra.mxu0 0.0
    %107 = vmatprep.mubr.f32.mxu0 0.0
    %108 = vmatmul.mubr.f32.gmra.mxu0 %v41
    %v109 = vpop.f32.mrf.mxu0
    %v110 = vadd.f32 %v37, %v109
    %v111 = vpop.f32.mrf.mxu0
    %112 = vdwg.mxu0
    %v113 = vmax.f32 %v110, 0.0
    %v114 = vld [vmem:[%s3] sm:$0xff]
    %v115 = vld [vmem:[%s3 + $0x8] sm:$0xff]
    %v116 = vld [vmem:[%s3 + $0x10] sm:$0xff]
    %v117 = vld [vmem:[%s3 + $0x18] sm:$0xff]
    %v118 = vld [vmem:[%s3 + $0x20] sm:$0xff]
    %v119 = vld [vmem:[%s3 + $0x28] sm:$0xff]
    %v120 = vld [vmem:[%s3 + $0x30] sm:$0xff]
    %v121 = vld [vmem:[%s3 + $0x38] sm:$0xff]
    %v122 = vld [vmem:[%s3 + $0x40] sm:$0xff]
    %v123 = vld [vmem:[%s3 + $0x48] sm:$0xff]
    %v124 = vld [vmem:[%s3 + $0x50] sm:$0xff]
    %v125 = vld [vmem:[%s3 + $0x58] sm:$0xff]
    %v126 = vld [vmem:[%s3 + $0x60] sm:$0xff]
    %v127 = vld [vmem:[%s3 + $0x68] sm:$0xff]
    %v128 = vld [vmem:[%s3 + $0x70] sm:$0xff]
    %v129 = vld [vmem:[%s3 + $0x78] sm:$0xff]
    %v130 = vld [vmem:[%s4] sm:$0x1]
    %v132 = vlaneseq
    %v133 = vshrl.u32 %v132, 7
    %v134 = vsub.s32 0, %v133
    %v135 = vrot.slane %v130, %v134
    %137 = vmatprep.subr.mxu0 0.0
    %138 = vmatpush1.msra.mxu0 %v129
    %139 = vmatprep.subr.mxu0 0.0
    %140 = vmatpush1.msra.mxu0 %v128
    %141 = vmatprep.subr.mxu0 0.0
    %142 = vmatpush1.msra.mxu0 %v127
    %143 = vmatprep.subr.mxu0 0.0
    %144 = vmatpush1.msra.mxu0 %v126
    %145 = vmatprep.subr.mxu0 0.0
    %146 = vmatpush1.msra.mxu0 %v125
    %147 = vmatprep.subr.mxu0 0.0
    %148 = vmatpush1.msra.mxu0 %v124
    %149 = vmatprep.subr.mxu0 0.0
    %150 = vmatpush1.msra.mxu0 %v123
    %151 = vmatprep.subr.mxu0 0.0
    %152 = vmatpush1.msra.mxu0 %v122
    %153 = vmatprep.subr.mxu0 0.0
    %154 = vmatpush1.msra.mxu0 %v121
    %155 = vmatprep.subr.mxu0 0.0
    %156 = vmatpush1.msra.mxu0 %v120
    %157 = vmatprep.subr.mxu0 0.0
    %158 = vmatpush1.msra.mxu0 %v119
    %159 = vmatprep.subr.mxu0 0.0
    %160 = vmatpush1.msra.mxu0 %v118
    %161 = vmatprep.subr.mxu0 0.0
    %162 = vmatpush1.msra.mxu0 %v117
    %163 = vmatprep.subr.mxu0 0.0
    %164 = vmatpush1.msra.mxu0 %v116
    %165 = vmatprep.subr.mxu0 0.0
    %166 = vmatpush1.msra.mxu0 %v115
    %167 = vmatprep.subr.mxu0 0.0
    %168 = vmatpush1.msra.mxu0 %v114
    %169 = vmatprep.subr.mxu0 0.0
    %170 = vmatpush2.msra.mxu0 0.0
    %171 = vmatprep.subr.mxu0 0.0
    %172 = vmatpush2.msra.mxu0 0.0
    %173 = vmatprep.subr.mxu0 0.0
    %174 = vmatpush2.msra.mxu0 0.0
    %175 = vmatprep.subr.mxu0 0.0
    %176 = vmatpush2.msra.mxu0 0.0
    %177 = vmatprep.subr.mxu0 0.0
    %178 = vmatpush2.msra.mxu0 0.0
    %179 = vmatprep.subr.mxu0 0.0
    %180 = vmatpush2.msra.mxu0 0.0
    %181 = vmatprep.subr.mxu0 0.0
    %182 = vmatpush2.msra.mxu0 0.0
    %183 = vmatprep.subr.mxu0 0.0
    %184 = vmatpush2.msra.mxu0 0.0
    %185 = vmatprep.subr.mxu0 0.0
    %186 = vmatpush2.msra.mxu0 0.0
    %187 = vmatprep.subr.mxu0 0.0
    %188 = vmatpush2.msra.mxu0 0.0
    %189 = vmatprep.subr.mxu0 0.0
    %190 = vmatpush2.msra.mxu0 0.0
    %191 = vmatprep.subr.mxu0 0.0
    %192 = vmatpush2.msra.mxu0 0.0
    %193 = vmatprep.subr.mxu0 0.0
    %194 = vmatpush2.msra.mxu0 0.0
    %195 = vmatprep.subr.mxu0 0.0
    %196 = vmatpush2.msra.mxu0 0.0
    %197 = vmatprep.subr.mxu0 0.0
    %198 = vmatpush2.msra.mxu0 0.0
    %199 = vmatprep.subr.mxu0 0.0
    %200 = vmatpush2.msra.mxu0 0.0
    %201 = vmatprep.mubr.f32.mxu0 0.0
    %202 = vmatmul.mubr.f32.gmra.mxu0 %v113
    %v203 = vpop.f32.mrf.mxu0
    %v204 = vadd.f32 %v135, %v203
    %v205 = vpop.f32.mrf.mxu0
    %206 = vdwg.mxu0
    %vm207 = vcmask 408576
    %208 = vst.msk [vmem:[#allocation2] sm:$0xff] %vm207, %v204
    %v209 = vld [vmem:[%s5] sm:$0xff]
    %v210 = vld [vmem:[%s5 + $0x8] sm:$0xff]
    %v211 = vld [vmem:[%s5 + $0x10] sm:$0xff]
    %v212 = vld [vmem:[%s5 + $0x18] sm:$0xff]
    %v213 = vld [vmem:[%s5 + $0x20] sm:$0xff]
    %v214 = vld [vmem:[%s5 + $0x28] sm:$0xff]
    %v215 = vld [vmem:[%s5 + $0x30] sm:$0xff]
    %v216 = vld [vmem:[%s5 + $0x38] sm:$0xff]
    %v217 = vld [vmem:[%s5 + $0x40] sm:$0xff]
    %v218 = vld [vmem:[%s5 + $0x48] sm:$0xff]
    %v219 = vld [vmem:[%s5 + $0x50] sm:$0xff]
    %v220 = vld [vmem:[%s5 + $0x58] sm:$0xff]
    %v221 = vld [vmem:[%s5 + $0x60] sm:$0xff]
    %v222 = vld [vmem:[%s5 + $0x68] sm:$0xff]
    %v223 = vld [vmem:[%s5 + $0x70] sm:$0xff]
    %v224 = vld [vmem:[%s5 + $0x78] sm:$0xff]
    %v225 = vld [vmem:[%s6] sm:$0x1]
    %v227 = vlaneseq
    %v228 = vshrl.u32 %v227, 7
    %v229 = vsub.s32 0, %v228
    %v230 = vrot.slane %v225, %v229
    %232 = vmatprep.subr.mxu0 0.0
    %233 = vmatpush1.msra.mxu0 %v224
    %234 = vmatprep.subr.mxu0 0.0
    %235 = vmatpush1.msra.mxu0 %v223
    %236 = vmatprep.subr.mxu0 0.0
    %237 = vmatpush1.msra.mxu0 %v222
    %238 = vmatprep.subr.mxu0 0.0
    %239 = vmatpush1.msra.mxu0 %v221
    %240 = vmatprep.subr.mxu0 0.0
    %241 = vmatpush1.msra.mxu0 %v220
    %242 = vmatprep.subr.mxu0 0.0
    %243 = vmatpush1.msra.mxu0 %v219
    %244 = vmatprep.subr.mxu0 0.0
    %245 = vmatpush1.msra.mxu0 %v218
    %246 = vmatprep.subr.mxu0 0.0
    %247 = vmatpush1.msra.mxu0 %v217
    %248 = vmatprep.subr.mxu0 0.0
    %249 = vmatpush1.msra.mxu0 %v216
    %250 = vmatprep.subr.mxu0 0.0
    %251 = vmatpush1.msra.mxu0 %v215
    %252 = vmatprep.subr.mxu0 0.0
    %253 = vmatpush1.msra.mxu0 %v214
    %254 = vmatprep.subr.mxu0 0.0
    %255 = vmatpush1.msra.mxu0 %v213
    %256 = vmatprep.subr.mxu0 0.0
    %257 = vmatpush1.msra.mxu0 %v212
    %258 = vmatprep.subr.mxu0 0.0
    %259 = vmatpush1.msra.mxu0 %v211
    %260 = vmatprep.subr.mxu0 0.0
    %261 = vmatpush1.msra.mxu0 %v210
    %262 = vmatprep.subr.mxu0 0.0
    %263 = vmatpush1.msra.mxu0 %v209
    %264 = vmatprep.subr.mxu0 0.0
    %265 = vmatpush2.msra.mxu0 0.0
    %266 = vmatprep.subr.mxu0 0.0
    %267 = vmatpush2.msra.mxu0 0.0
    %268 = vmatprep.subr.mxu0 0.0
    %269 = vmatpush2.msra.mxu0 0.0
    %270 = vmatprep.subr.mxu0 0.0
    %271 = vmatpush2.msra.mxu0 0.0
    %272 = vmatprep.subr.mxu0 0.0
    %273 = vmatpush2.msra.mxu0 0.0
    %274 = vmatprep.subr.mxu0 0.0
    %275 = vmatpush2.msra.mxu0 0.0
    %276 = vmatprep.subr.mxu0 0.0
    %277 = vmatpush2.msra.mxu0 0.0
    %278 = vmatprep.subr.mxu0 0.0
    %279 = vmatpush2.msra.mxu0 0.0
    %280 = vmatprep.subr.mxu0 0.0
    %281 = vmatpush2.msra.mxu0 0.0
    %282 = vmatprep.subr.mxu0 0.0
    %283 = vmatpush2.msra.mxu0 0.0
    %284 = vmatprep.subr.mxu0 0.0
    %285 = vmatpush2.msra.mxu0 0.0
    %286 = vmatprep.subr.mxu0 0.0
    %287 = vmatpush2.msra.mxu0 0.0
    %288 = vmatprep.subr.mxu0 0.0
    %289 = vmatpush2.msra.mxu0 0.0
    %290 = vmatprep.subr.mxu0 0.0
    %291 = vmatpush2.msra.mxu0 0.0
    %292 = vmatprep.subr.mxu0 0.0
    %293 = vmatpush2.msra.mxu0 0.0
    %294 = vmatprep.subr.mxu0 0.0
    %295 = vmatpush2.msra.mxu0 0.0
    %296 = vmatprep.mubr.f32.mxu0 0.0
    %297 = vmatmul.mubr.f32.gmra.mxu0 %v113
    %v298 = vpop.f32.mrf.mxu0
    %v299 = vadd.f32 %v230, %v298
    %v300 = vpop.f32.mrf.mxu0
    %301 = vdwg.mxu0
    %vm302 = vcmask 48128
    %303 = vst.msk [vmem:[#allocation4] sm:$0xff] %vm302, %v299
    // Predicated region
    $region30: #{tpu_custom_call.1} parent=1 // pred_check
      _
    $region31: #{tpu_custom_call.1} parent=1 // pred_check_branch
      %305 = sbr.rel (0) target = $region33
    $region32: #{tpu_custom_call.1} parent=1 // pred_region
      %s307 = ssub.s32 128, 128
      %308 = vsyncadd [#allocation3], %s307
      %s310 = sshll.u32 [#allocation2], 4
      %s311 = int_to_ptr.vmem [resolvable:$true] %s310
      %313 = dma.vmem_to_hbm [thread:$0]  %s311, 128, %s7, [#allocation3]
    $region33: #{tpu_custom_call.1} parent=1 // pred_fallthru
      _
    // Predicated region
    $region34: #{tpu_custom_call.1} parent=1 // pred_check
      _
    $region35: #{tpu_custom_call.1} parent=1 // pred_check_branch
      %315 = sbr.rel (0) target = $region37
    $region36: #{tpu_custom_call.1} parent=1 // pred_region
      %s317 = ssub.s32 128, 128
      %318 = vsyncadd [#allocation5], %s317
      %s320 = sshll.u32 [#allocation4], 4
      %s321 = int_to_ptr.vmem [resolvable:$true] %s320
      %323 = dma.vmem_to_hbm [thread:$0]  %s321, 128, %s8, [#allocation5]
    $region37: #{tpu_custom_call.1} parent=1 // pred_fallthru
      _
    // Predicated region
    $region38: #{tpu_custom_call.1} parent=1 // pred_check
      _
    $region39: #{tpu_custom_call.1} parent=1 // pred_check_branch
      %325 = sbr.rel (0) target = $region41
    $region40: #{tpu_custom_call.1} parent=1 // pred_region
      %326 = dma.done [#allocation3], 128
    $region41: #{tpu_custom_call.1} parent=1 // pred_fallthru
      _
    // Predicated region
    $region42: #{tpu_custom_call.1} parent=1 // pred_check
      _
    $region43: #{tpu_custom_call.1} parent=1 // pred_check_branch
      %328 = sbr.rel (0) target = $region45
    $region44: #{tpu_custom_call.1} parent=1 // pred_region
      %329 = dma.done [#allocation5], 128
    $region45: #{tpu_custom_call.1} parent=1 // pred_fallthru
      _
    %330 = vsyncpa [#allocation3], 1
    %331 = vsyncpa [#allocation5], 1

</llo_original>
